<compile_context>
chip_gen: v6e
topology: v6e:2x2x1
jax: 0.10.0
libtpu: 0.0.40
codegen_flags: <defaults>
</compile_context>

<pallas_src>
from functools import partial

import jax
import jax.numpy as jnp
from jax.experimental import pallas as pl
from jax.experimental.pallas import tpu as pltpu


def _round_up(x, m):
    return (x + m - 1) // m * m


def rnn_individualq_kernel(x_ref, h0_ref,
                           w1x_ref, b1_ref,
                           wgx_ref, wgh_ref, eh_ref, bg_ref,
                           wout_ref, bout_ref,
                           out_ref,
                           *, H, compute_dtype):
    cd = compute_dtype
    x_all = x_ref[...].astype(cd)        # (tb, n_agents*D_in)  all agents' obs
    h_all = h0_ref[...].astype(cd)       # (tb, n_agents*H)     all agents' hidden

    # fc1 + ReLU for this agent (weight rows belonging to other agents are zero).
    a1 = jnp.maximum(
        jnp.dot(x_all, w1x_ref[...], preferred_element_type=jnp.float32)
        + b1_ref[...], 0.0)                                                  # (tb, H)

    # This agent's incoming hidden state via an identity-block matmul
    # (keeps everything lane-dense; no dynamic lane slicing).
    h_in = jnp.dot(h_all, eh_ref[...], preferred_element_type=jnp.float32)   # (tb, H)

    # GRU gates, PyTorch GRUCell semantics (gate order r, z, n), as two
    # accumulating matmuls -- no [a1 | h] lane concat.  g columns: [r | z | i_n | h_n]
    g = (jnp.dot(a1.astype(cd), wgx_ref[...], preferred_element_type=jnp.float32)
         + jnp.dot(h_all, wgh_ref[...], preferred_element_type=jnp.float32)
         + bg_ref[...])                                                      # (tb, 4H)
    r = jax.nn.sigmoid(g[:, :H])
    z = jax.nn.sigmoid(g[:, H:2 * H])
    n = jnp.tanh(g[:, 2 * H:3 * H] + r * g[:, 3 * H:])
    h = (1.0 - z) * n + z * h_in                                             # (tb, H)

    # Fused output head: one matmul emits the whole packed, lane-dense slab
    #   [h | q_tot | q_ind | zero pad]
    out = (jnp.dot(h.astype(cd), wout_ref[...], preferred_element_type=jnp.float32)
           + bout_ref[...])
    out_ref[...] = out.astype(out_ref.dtype)


def rnn_individualq_forward(inputs, hidden, params, n_agents, *,
                            tile_b=2048,
                            compute_dtype=jnp.float32,
                            out_dtype=jnp.bfloat16):
    """Forward of RNN_individualQ_Agent. Returns (q_tot, h, q_ind), each (N, feat)."""
    f32 = jnp.float32
    cd = compute_dtype
    N, D_in = inputs.shape
    H = params["w_hh"].shape[0]
    A = params["w2"].shape[-1]
    assert N % n_agents == 0
    batch = N // n_agents

    # ---- activations: free reshapes only (torch row layout kept; no transposes) ----
    x = inputs.astype(f32).reshape(batch, n_agents * D_in)
    h0 = hidden.astype(f32).reshape(-1, H).reshape(batch, n_agents * H)

    tb = min(tile_b, _round_up(batch, 8))          # batch tile (multiple of 8 sublanes)
    B_pad = _round_up(batch, tb)
    if B_pad != batch:
        x = jnp.pad(x, ((0, B_pad - batch), (0, 0)))
        h0 = jnp.pad(h0, ((0, B_pad - batch), (0, 0)))

    # ---- weight packing (host side, tiny); matmul weights pre-cast to compute dtype ----
    eye_a = jnp.eye(n_agents, dtype=f32)
    w1 = params["w1"].astype(f32)                           # (D_in, H)
    b1 = params["b1"].astype(f32).reshape(1, H)
    # per-agent row-selected fc1 weight: (n_agents, n_agents*D_in, H)
    w1x = jnp.einsum("ab,dh->abdh", eye_a, w1).reshape(n_agents, n_agents * D_in, H)

    w_ih = params["w_ih"].astype(f32)                       # (H, 3H), gate order r,z,n
    w_hh = params["w_hh"].astype(f32)
    b_ih = params["b_ih"].astype(f32)
    b_hh = params["b_hh"].astype(f32)
    zeros_hh = jnp.zeros((H, H), f32)
    # gate columns [r | z | i_n | h_n]
    w_gx = jnp.concatenate([w_ih, zeros_hh], axis=1)                              # (H, 4H)
    w_gh = jnp.concatenate([w_hh[:, :2 * H], zeros_hh, w_hh[:, 2 * H:]], axis=1)  # (H, 4H)
    w_gh_exp = jnp.einsum("ab,dh->abdh", eye_a, w_gh).reshape(n_agents, n_agents * H, 4 * H)
    b_g = jnp.concatenate([b_ih[:2 * H] + b_hh[:2 * H], b_ih[2 * H:], b_hh[2 * H:]]
                          ).reshape(1, 4 * H)
    # per-agent hidden-state extractor (identity block)
    e_h = jnp.einsum("ab,dh->abdh", eye_a, jnp.eye(H, dtype=f32)
                     ).reshape(n_agents, n_agents * H, H)

    w2 = params["w2"].astype(f32)                           # (H, A)
    b2 = params["b2"].astype(f32)
    w_ind = params["w_ind"].astype(f32)                     # (n_agents, H, A)
    b_ind = params["b_ind"].astype(f32)                     # (n_agents, A)
    P = _round_up(H + 2 * A, 128)                           # lane-dense slab width
    pad_w = P - (H + 2 * A)
    w_out = jnp.concatenate([
        jnp.broadcast_to(jnp.eye(H, dtype=f32)[None], (n_agents, H, H)),   # h pass-through
        w2[None] + w_ind,                                                  # q_tot head
        w_ind,                                                             # q_ind head
        jnp.zeros((n_agents, H, pad_w), f32),
    ], axis=-1)                                             # (n_agents, H, P)
    b_out = jnp.concatenate([
        jnp.zeros((n_agents, H), f32),
        b2[None] + b_ind,
        b_ind,
        jnp.zeros((n_agents, pad_w), f32),
    ], axis=-1).reshape(n_agents, 1, P)

    w1x, w_gx, w_gh_exp, e_h, w_out = (
        t.astype(cd) for t in (w1x, w_gx, w_gh_exp, e_h, w_out))

    grid = (B_pad // tb, n_agents)
    kernel = partial(rnn_individualq_kernel, H=H, compute_dtype=cd)

    rows = B_pad * n_agents
    cd_b = jnp.dtype(cd).itemsize
    out_b = jnp.dtype(out_dtype).itemsize
    flops_per_row = 2 * (n_agents * D_in * H       # fc1
                         + n_agents * H * H        # h extract
                         + H * 4 * H               # gates (a1 path)
                         + n_agents * H * 4 * H    # gates (h path)
                         + H * P)                  # fused head
    cost = pl.CostEstimate(
        flops=int(rows * flops_per_row),
        transcendentals=int(rows * 3 * H),
        bytes_accessed=int(x.size * 4 + h0.size * 4 + rows * P * out_b
                           + (B_pad // tb) * (w1x.size + w_gh_exp.size
                                              + e_h.size + w_out.size) * cd_b),
    )

    slab = pl.pallas_call(
        kernel,
        out_shape=jax.ShapeDtypeStruct((B_pad, n_agents * P), out_dtype),
        grid_spec=pltpu.PrefetchScalarGridSpec(
            num_scalar_prefetch=0,
            grid=grid,
            in_specs=[
                # activations: agent-invariant index map -> DMA'd once per batch tile
                pl.BlockSpec((tb, n_agents * D_in), lambda j, a: (j, 0)),        # x
                pl.BlockSpec((tb, n_agents * H), lambda j, a: (j, 0)),           # h0
                # per-agent / shared weights (resident or tiny per-step re-fetches)
                pl.BlockSpec((None, n_agents * D_in, H), lambda j, a: (a, 0, 0)),  # W1x
                pl.BlockSpec((1, H), lambda j, a: (0, 0)),                         # b1
                pl.BlockSpec((H, 4 * H), lambda j, a: (0, 0)),                     # Wgx
                pl.BlockSpec((None, n_agents * H, 4 * H), lambda j, a: (a, 0, 0)),  # Wgh
                pl.BlockSpec((None, n_agents * H, H), lambda j, a: (a, 0, 0)),      # E
                pl.BlockSpec((1, 4 * H), lambda j, a: (0, 0)),                     # bg
                pl.BlockSpec((None, H, P), lambda j, a: (a, 0, 0)),                # Wout
                pl.BlockSpec((None, 1, P), lambda j, a: (a, 0, 0)),                # bout
            ],
            # lane-dense slab (P multiple of 128) per agent -> unmasked stores
            out_specs=pl.BlockSpec((tb, P), lambda j, a: (j, a)),
        ),
        compiler_params=pltpu.CompilerParams(
            # shard the big batch-tile axis across TensorCores, not the tiny agent axis
            dimension_semantics=("parallel", "arbitrary"),
        ),
        cost_estimate=cost,
    )(x, h0, w1x, b1, w_gx, w_gh_exp, e_h, b_g, w_out, b_out)

    # free reshapes / slices back to torch row order (agent fastest within N)
    slab = slab[:batch].reshape(batch, n_agents, P)
    h = slab[..., :H].reshape(N, H)
    q_tot = slab[..., H:H + A].reshape(N, A)
    q_ind = slab[..., H + A:H + 2 * A].reshape(N, A)
    return q_tot, h, q_ind


def reference_forward(inputs, hidden, p, n_agents):
    H = p["w_hh"].shape[0]
    A = p["w2"].shape[-1]
    x = jax.nn.relu(inputs @ p["w1"] + p["b1"])
    h_in = hidden.reshape(-1, H)
    gi = x @ p["w_ih"] + p["b_ih"]
    gh = h_in @ p["w_hh"] + p["b_hh"]
    r = jax.nn.sigmoid(gi[:, :H] + gh[:, :H])
    z = jax.nn.sigmoid(gi[:, H:2 * H] + gh[:, H:2 * H])
    n = jnp.tanh(gi[:, 2 * H:] + r * gh[:, 2 * H:])
    h = (1.0 - z) * n + z * h_in
    q = h @ p["w2"] + p["b2"]
    h_new = h.reshape(-1, n_agents, H)
    q_ind = jnp.einsum("bih,iha->bia", h_new, p["w_ind"]) + p["b_ind"][None]
    q_ind = q_ind.reshape(-1, A)
    return q + q_ind, h, q_ind


if __name__ == "__main__":
    key = jax.random.PRNGKey(0)
    batch, n_agents, n_actions = 2, 3, 6
    rnn_hidden_dim, input_shape = 32, 16
    N = batch * n_agents

    ks = jax.random.split(key, 12)
    s = 0.1
    params = {
        "w1":    jax.random.normal(ks[0], (input_shape, rnn_hidden_dim), jnp.float32) * s,
        "b1":    jax.random.normal(ks[1], (rnn_hidden_dim,), jnp.float32) * s,
        "w_ih":  jax.random.normal(ks[2], (rnn_hidden_dim, 3 * rnn_hidden_dim), jnp.float32) * s,
        "b_ih":  jax.random.normal(ks[3], (3 * rnn_hidden_dim,), jnp.float32) * s,
        "w_hh":  jax.random.normal(ks[4], (rnn_hidden_dim, 3 * rnn_hidden_dim), jnp.float32) * s,
        "b_hh":  jax.random.normal(ks[5], (3 * rnn_hidden_dim,), jnp.float32) * s,
        "w2":    jax.random.normal(ks[6], (rnn_hidden_dim, n_actions), jnp.float32) * s,
        "b2":    jax.random.normal(ks[7], (n_actions,), jnp.float32) * s,
        "w_ind": jax.random.normal(ks[8], (n_agents, rnn_hidden_dim, n_actions), jnp.float32) * s,
        "b_ind": jax.random.normal(ks[9], (n_agents, n_actions), jnp.float32) * s,
    }

    inputs = jax.random.normal(ks[10], (N, input_shape), jnp.float32)
    hidden = jax.random.normal(ks[11], (N, rnn_hidden_dim), jnp.float32)

    ref_q_tot, ref_h, ref_q_ind = reference_forward(inputs, hidden, params, n_agents)

    # f32 output slab: tight check of the kernel math.
    q_tot, h_out, q_ind = rnn_individualq_forward(
        inputs, hidden, params, n_agents, out_dtype=jnp.float32)
    jax.block_until_ready((q_tot, h_out, q_ind))
    assert jnp.allclose(q_tot, ref_q_tot, atol=5e-3, rtol=5e-3)
    assert jnp.allclose(h_out, ref_h, atol=5e-3, rtol=5e-3)
    assert jnp.allclose(q_ind, ref_q_ind, atol=5e-3, rtol=5e-3)

    # Default config (bf16 slab -> half the HBM write traffic): bf16-level tolerance.
    q_tot_b, h_out_b, q_ind_b = rnn_individualq_forward(inputs, hidden, params, n_agents)
    jax.block_until_ready((q_tot_b, h_out_b, q_ind_b))
    assert jnp.allclose(q_tot_b.astype(jnp.float32), ref_q_tot, atol=3e-2, rtol=3e-2)
    assert jnp.allclose(h_out_b.astype(jnp.float32), ref_h, atol=3e-2, rtol=3e-2)
    assert jnp.allclose(q_ind_b.astype(jnp.float32), ref_q_ind, atol=3e-2, rtol=3e-2)

    print("KERNEL_OK")
</pallas_src>

<mosaic_0001>
module attributes {stable_mosaic.version = 11 : i64} {
  func.func @rnn_individualq_kernel(%arg0: i32, %arg1: i32, %arg2: memref<8x48xf32, #tpu.memory_space<vmem>>, %arg3: memref<8x96xf32, #tpu.memory_space<vmem>>, %arg4: memref<1x48x32xf32, #tpu.memory_space<vmem>>, %arg5: memref<1x32xf32, #tpu.memory_space<vmem>>, %arg6: memref<32x128xf32, #tpu.memory_space<vmem>>, %arg7: memref<1x96x128xf32, #tpu.memory_space<vmem>>, %arg8: memref<1x96x32xf32, #tpu.memory_space<vmem>>, %arg9: memref<1x128xf32, #tpu.memory_space<vmem>>, %arg10: memref<1x32x128xf32, #tpu.memory_space<vmem>>, %arg11: memref<1x1x128xf32, #tpu.memory_space<vmem>>, %arg12: memref<8x128xf32, #tpu.memory_space<vmem>>) attributes {dimension_semantics = [#tpu.dimension_semantics<parallel>, #tpu.dimension_semantics<arbitrary>], iteration_bounds = array<i64: 1, 3>, scalar_prefetch = 0 : i64, scratch_operands = 0 : i64, tpu.core_type = #tpu.core_type<tc>, window_params = [{transform_indices = @transform_0, window_bounds = array<i64: 8, 48>}, {transform_indices = @transform_1, window_bounds = array<i64: 8, 96>}, {transform_indices = @transform_2, window_bounds = array<i64: 1, 48, 32>}, {pipeline_mode = #tpu.pipeline_mode<synchronous>, transform_indices = @transform_3, window_bounds = array<i64: 1, 32>}, {pipeline_mode = #tpu.pipeline_mode<synchronous>, transform_indices = @transform_4, window_bounds = array<i64: 32, 128>}, {transform_indices = @transform_5, window_bounds = array<i64: 1, 96, 128>}, {transform_indices = @transform_6, window_bounds = array<i64: 1, 96, 32>}, {pipeline_mode = #tpu.pipeline_mode<synchronous>, transform_indices = @transform_7, window_bounds = array<i64: 1, 128>}, {transform_indices = @transform_8, window_bounds = array<i64: 1, 32, 128>}, {transform_indices = @transform_9, window_bounds = array<i64: 1, 1, 128>}, {transform_indices = @transform_10, window_bounds = array<i64: 8, 128>}]} {
    %c0 = arith.constant 0 : index
    %c0_0 = arith.constant 0 : index
    %0 = vector.load %arg2[%c0, %c0_0] : memref<8x48xf32, #tpu.memory_space<vmem>>, vector<8x48xf32>
    %c0_1 = arith.constant 0 : index
    %c0_2 = arith.constant 0 : index
    %1 = vector.load %arg3[%c0_1, %c0_2] : memref<8x96xf32, #tpu.memory_space<vmem>>, vector<8x96xf32>
    %c0_3 = arith.constant 0 : index
    %c0_4 = arith.constant 0 : index
    %c0_5 = arith.constant 0 : index
    %2 = vector.load %arg4[%c0_3, %c0_4, %c0_5] : memref<1x48x32xf32, #tpu.memory_space<vmem>>, vector<1x48x32xf32>
    %3 = vector.shape_cast %2 : vector<1x48x32xf32> to vector<48x32xf32>
    %cst = arith.constant dense<0.000000e+00> : vector<8x32xf32>
    %4 = tpu.matmul %0, %3, %cst {dimension_numbers = #tpu.dot_dimension_numbers<[1], [0], [0], [1], [0, 0, 1, 1], [], []>} : vector<8x48xf32>, vector<48x32xf32>, vector<8x32xf32> -> vector<8x32xf32>
    %c0_6 = arith.constant 0 : index
    %c0_7 = arith.constant 0 : index
    %5 = vector.load %arg5[%c0_6, %c0_7] : memref<1x32xf32, #tpu.memory_space<vmem>>, vector<1x32xf32>
    %6 = vector.broadcast %5 : vector<1x32xf32> to vector<8x32xf32>
    %7 = arith.addf %4, %6 : vector<8x32xf32>
    %cst_8 = arith.constant 0.000000e+00 : f32
    %8 = vector.broadcast %cst_8 : f32 to vector<8x32xf32>
    %9 = arith.maximumf %7, %8 : vector<8x32xf32>
    %c0_9 = arith.constant 0 : index
    %c0_10 = arith.constant 0 : index
    %c0_11 = arith.constant 0 : index
    %10 = vector.load %arg8[%c0_9, %c0_10, %c0_11] : memref<1x96x32xf32, #tpu.memory_space<vmem>>, vector<1x96x32xf32>
    %11 = vector.shape_cast %10 : vector<1x96x32xf32> to vector<96x32xf32>
    %cst_12 = arith.constant dense<0.000000e+00> : vector<8x32xf32>
    %12 = tpu.matmul %1, %11, %cst_12 {dimension_numbers = #tpu.dot_dimension_numbers<[1], [0], [0], [1], [0, 0, 1, 1], [], []>} : vector<8x96xf32>, vector<96x32xf32>, vector<8x32xf32> -> vector<8x32xf32>
    %c0_13 = arith.constant 0 : index
    %c0_14 = arith.constant 0 : index
    %13 = vector.load %arg6[%c0_13, %c0_14] : memref<32x128xf32, #tpu.memory_space<vmem>>, vector<32x128xf32>
    %cst_15 = arith.constant dense<0.000000e+00> : vector<8x128xf32>
    %14 = tpu.matmul %9, %13, %cst_15 {dimension_numbers = #tpu.dot_dimension_numbers<[1], [0], [0], [1], [0, 0, 1, 1], [], []>} : vector<8x32xf32>, vector<32x128xf32>, vector<8x128xf32> -> vector<8x128xf32>
    %c0_16 = arith.constant 0 : index
    %c0_17 = arith.constant 0 : index
    %c0_18 = arith.constant 0 : index
    %15 = vector.load %arg7[%c0_16, %c0_17, %c0_18] : memref<1x96x128xf32, #tpu.memory_space<vmem>>, vector<1x96x128xf32>
    %16 = vector.shape_cast %15 : vector<1x96x128xf32> to vector<96x128xf32>
    %cst_19 = arith.constant dense<0.000000e+00> : vector<8x128xf32>
    %17 = tpu.matmul %1, %16, %cst_19 {dimension_numbers = #tpu.dot_dimension_numbers<[1], [0], [0], [1], [0, 0, 1, 1], [], []>} : vector<8x96xf32>, vector<96x128xf32>, vector<8x128xf32> -> vector<8x128xf32>
    %18 = arith.addf %14, %17 : vector<8x128xf32>
    %c0_20 = arith.constant 0 : index
    %c0_21 = arith.constant 0 : index
    %19 = vector.load %arg9[%c0_20, %c0_21] : memref<1x128xf32, #tpu.memory_space<vmem>>, vector<1x128xf32>
    %20 = vector.broadcast %19 : vector<1x128xf32> to vector<8x128xf32>
    %21 = arith.addf %18, %20 : vector<8x128xf32>
    %22 = vector.extract_strided_slice %21 {offsets = [0, 0], sizes = [8, 32], strides = [1, 1]} : vector<8x128xf32> to vector<8x32xf32>
    %23 = arith.negf %22 : vector<8x32xf32>
    %24 = math.exp %23 : vector<8x32xf32>
    %cst_22 = arith.constant 1.000000e+00 : f32
    %25 = vector.broadcast %cst_22 : f32 to vector<8x32xf32>
    %26 = arith.addf %25, %24 : vector<8x32xf32>
    %27 = arith.divf %25, %26 : vector<8x32xf32>
    %28 = vector.extract_strided_slice %21 {offsets = [0, 32], sizes = [8, 32], strides = [1, 1]} : vector<8x128xf32> to vector<8x32xf32>
    %29 = arith.negf %28 : vector<8x32xf32>
    %30 = math.exp %29 : vector<8x32xf32>
    %cst_23 = arith.constant 1.000000e+00 : f32
    %31 = vector.broadcast %cst_23 : f32 to vector<8x32xf32>
    %32 = arith.addf %31, %30 : vector<8x32xf32>
    %33 = arith.divf %31, %32 : vector<8x32xf32>
    %34 = vector.extract_strided_slice %21 {offsets = [0, 64], sizes = [8, 32], strides = [1, 1]} : vector<8x128xf32> to vector<8x32xf32>
    %35 = vector.extract_strided_slice %21 {offsets = [0, 96], sizes = [8, 32], strides = [1, 1]} : vector<8x128xf32> to vector<8x32xf32>
    %36 = arith.mulf %27, %35 : vector<8x32xf32>
    %37 = arith.addf %34, %36 : vector<8x32xf32>
    %38 = math.tanh %37 : vector<8x32xf32>
    %cst_24 = arith.constant 1.000000e+00 : f32
    %39 = vector.broadcast %cst_24 : f32 to vector<8x32xf32>
    %40 = arith.subf %39, %33 : vector<8x32xf32>
    %41 = arith.mulf %40, %38 : vector<8x32xf32>
    %42 = arith.mulf %33, %12 : vector<8x32xf32>
    %43 = arith.addf %41, %42 : vector<8x32xf32>
    %c0_25 = arith.constant 0 : index
    %c0_26 = arith.constant 0 : index
    %c0_27 = arith.constant 0 : index
    %44 = vector.load %arg10[%c0_25, %c0_26, %c0_27] : memref<1x32x128xf32, #tpu.memory_space<vmem>>, vector<1x32x128xf32>
    %45 = vector.shape_cast %44 : vector<1x32x128xf32> to vector<32x128xf32>
    %cst_28 = arith.constant dense<0.000000e+00> : vector<8x128xf32>
    %46 = tpu.matmul %43, %45, %cst_28 {dimension_numbers = #tpu.dot_dimension_numbers<[1], [0], [0], [1], [0, 0, 1, 1], [], []>} : vector<8x32xf32>, vector<32x128xf32>, vector<8x128xf32> -> vector<8x128xf32>
    %c0_29 = arith.constant 0 : index
    %c0_30 = arith.constant 0 : index
    %c0_31 = arith.constant 0 : index
    %47 = vector.load %arg11[%c0_29, %c0_30, %c0_31] : memref<1x1x128xf32, #tpu.memory_space<vmem>>, vector<1x1x128xf32>
    %48 = vector.shape_cast %47 : vector<1x1x128xf32> to vector<1x128xf32>
    %49 = vector.broadcast %48 : vector<1x128xf32> to vector<8x128xf32>
    %50 = arith.addf %46, %49 : vector<8x128xf32>
    %c0_32 = arith.constant 0 : index
    %c0_33 = arith.constant 0 : index
    %51 = vector.load %arg12[%c0_32, %c0_33] : memref<8x128xf32, #tpu.memory_space<vmem>>, vector<8x128xf32>
    tpu.vector_store %arg12[%c0_32, %c0_33], %50 {strides = array<i32>} : memref<8x128xf32, #tpu.memory_space<vmem>>, vector<8x128xf32>,
    return
  }
  func.func @transform_0(%arg0: i32, %arg1: i32) -> (i32, i32) {
    %c0_i32 = arith.constant 0 : i32
    %c0_i32_0 = arith.constant 0 : i32
    return %arg0, %c0_i32 : i32, i32
  }
  func.func @transform_1(%arg0: i32, %arg1: i32) -> (i32, i32) {
    %c0_i32 = arith.constant 0 : i32
    %c0_i32_0 = arith.constant 0 : i32
    return %arg0, %c0_i32 : i32, i32
  }
  func.func @transform_2(%arg0: i32, %arg1: i32) -> (i32, i32, i32) {
    %c0_i32 = arith.constant 0 : i32
    %c0_i32_0 = arith.constant 0 : i32
    %c0_i32_1 = arith.constant 0 : i32
    return %arg1, %c0_i32, %c0_i32_0 : i32, i32, i32
  }
  func.func @transform_3(%arg0: i32, %arg1: i32) -> (i32, i32) {
    %c0_i32 = arith.constant 0 : i32
    %c0_i32_0 = arith.constant 0 : i32
    %c0_i32_1 = arith.constant 0 : i32
    return %c0_i32, %c0_i32_0 : i32, i32
  }
  func.func @transform_4(%arg0: i32, %arg1: i32) -> (i32, i32) {
    %c0_i32 = arith.constant 0 : i32
    %c0_i32_0 = arith.constant 0 : i32
    %c0_i32_1 = arith.constant 0 : i32
    return %c0_i32, %c0_i32_0 : i32, i32
  }
  func.func @transform_5(%arg0: i32, %arg1: i32) -> (i32, i32, i32) {
    %c0_i32 = arith.constant 0 : i32
    %c0_i32_0 = arith.constant 0 : i32
    %c0_i32_1 = arith.constant 0 : i32
    return %arg1, %c0_i32, %c0_i32_0 : i32, i32, i32
  }
  func.func @transform_6(%arg0: i32, %arg1: i32) -> (i32, i32, i32) {
    %c0_i32 = arith.constant 0 : i32
    %c0_i32_0 = arith.constant 0 : i32
    %c0_i32_1 = arith.constant 0 : i32
    return %arg1, %c0_i32, %c0_i32_0 : i32, i32, i32
  }
  func.func @transform_7(%arg0: i32, %arg1: i32) -> (i32, i32) {
    %c0_i32 = arith.constant 0 : i32
    %c0_i32_0 = arith.constant 0 : i32
    %c0_i32_1 = arith.constant 0 : i32
    return %c0_i32, %c0_i32_0 : i32, i32
  }
  func.func @transform_8(%arg0: i32, %arg1: i32) -> (i32, i32, i32) {
    %c0_i32 = arith.constant 0 : i32
    %c0_i32_0 = arith.constant 0 : i32
    %c0_i32_1 = arith.constant 0 : i32
    return %arg1, %c0_i32, %c0_i32_0 : i32, i32, i32
  }
  func.func @transform_9(%arg0: i32, %arg1: i32) -> (i32, i32, i32) {
    %c0_i32 = arith.constant 0 : i32
    %c0_i32_0 = arith.constant 0 : i32
    %c0_i32_1 = arith.constant 0 : i32
    return %arg1, %c0_i32, %c0_i32_0 : i32, i32, i32
  }
  func.func @transform_10(%arg0: i32, %arg1: i32) -> (i32, i32) {
    %c0_i32 = arith.constant 0 : i32
    return %arg0, %arg1 : i32, i32
  }
}

</mosaic_0001>

<llo_original>
// kernel: tpu_custom_call.1
$region0: #{tpu_custom_call.1}
  #allocation0 [shape = 'u32[]', space=smem, size = 0x4, offset = 0x4, fixed_abs, tag = 'smem constant byte address 0x4 - core index']
  #allocation1 [shape = 'u32[144,128]{1,0:T(1,128)}', space=vmem, size = 0x12000, scoped, tag = 'internal scratch']
  %s0 = inlined_call_operand.vmem [shape: f32[8,48], index: 0, kind: input, shape index: {}]
  %s1 = inlined_call_operand.vmem [shape: f32[8,96], index: 1, kind: input, shape index: {}]
  %s2 = inlined_call_operand.vmem [shape: f32[3,48,32], index: 2, kind: input, shape index: {}]
  %s3 = inlined_call_operand.vmem [shape: f32[1,32], index: 3, kind: input, shape index: {}]
  %s4 = inlined_call_operand.vmem [shape: f32[32,128], index: 4, kind: input, shape index: {}]
  %s5 = inlined_call_operand.vmem [shape: f32[3,96,128], index: 5, kind: input, shape index: {}]
  %s6 = inlined_call_operand.vmem [shape: f32[3,96,32], index: 6, kind: input, shape index: {}]
  %s7 = inlined_call_operand.vmem [shape: f32[1,128], index: 7, kind: input, shape index: {}]
  %s8 = inlined_call_operand.vmem [shape: f32[3,32,128], index: 8, kind: input, shape index: {}]
  %s9 = inlined_call_operand.vmem [shape: f32[3,1,128], index: 9, kind: input, shape index: {}]
  %s10 = inlined_call_operand.hbm [shape: f32[8,384], index: 10, kind: output, shape index: {}]
  %s11 = sld [smem:[#allocation0]]
  $region73: #{tpu_custom_call.1} parent=0
    _
  %s13 = ssub.s32 1, %s11
  %s14 = scalar_select 0, %s13, %s11
  $region1: #{tpu_custom_call.1} parent=0
    #allocation2 [shape = 'u8[8192]{0}', space=vmem, size = 0x2000, scoped, tag = 'output window, operand 0']
    #allocation3 [shape = 's32[2]{0}', space=sflag, size = 0x8, scoped, tag = 'scoped memory for tpu_custom_call.1']
    %15 = vsyncpa [#allocation3], 0
    %s16 = scalar_lea.sflag [#allocation3], 1
    %17 = vsyncpa %s16, 0
    loop: start=0, step=1, limit=5
    $region2: #{tpu_custom_call.1} parent=1 // loop_pre_header
      _
    $region3: #{tpu_custom_call.1} parent=1 // loop_header
      %s19 = sphi 0, %s23
      %p20 = scmp.ge.s32.totalorder %s19, 5
      %s26 = sphi 0, %s38
      %s27 = sphi 0, %s34
      %s28 = sphi 0, %s26
      %s29 = sphi 0, %s27
      %s30 = sphi 0, %s28
      %s31 = sphi 0, %s29
      %s41 = sphi 0, %s43
      %s44 = sphi 0, %s41
      %s45 = sphi 0, %s44
      %s61 = sphi 0, %s45
      %s67 = sphi 0, %s69
      %s70 = sphi 0, %s67
      %s71 = sphi 0, %s70
      %s87 = sphi 0, %s71
      %s93 = sphi 0, %s95
      %s96 = sphi 0, %s93
      %s97 = sphi 0, %s96
      %s113 = sphi 0, %s97
      %s117 = sphi 0, %s117
      %s119 = sphi 0, %s117
      %s120 = sphi 0, %s119
      %s134 = sphi 0, %s120
      %s138 = sphi 0, %s138
      %s140 = sphi 0, %s138
      %s141 = sphi 0, %s140
      %s155 = sphi 0, %s141
      %s161 = sphi 0, %s163
      %s164 = sphi 0, %s161
      %s165 = sphi 0, %s164
      %s181 = sphi 0, %s165
      %s187 = sphi 0, %s189
      %s190 = sphi 0, %s187
      %s191 = sphi 0, %s190
      %s207 = sphi 0, %s191
      %s211 = sphi 0, %s211
      %s213 = sphi 0, %s211
      %s214 = sphi 0, %s213
      %s228 = sphi 0, %s214
      %s234 = sphi 0, %s236
      %s237 = sphi 0, %s234
      %s238 = sphi 0, %s237
      %s254 = sphi 0, %s238
      %s260 = sphi 0, %s262
      %s263 = sphi 0, %s260
      %s264 = sphi 0, %s263
      %s280 = sphi 0, %s264
      %s288 = sphi 0, %s290
      %s291 = sphi 0, %s288
      %s292 = sphi 0, %s291
      %s308 = sphi 0, %s292
    $region4: #{tpu_custom_call.1} parent=1 // loop_header_branch
      %22 = sbr.rel (%p20) target = $region8
    $region5: #{tpu_custom_call.1} parent=1 // loop_body
      %s24 = ssub.s32 %s19, 1
      %s25 = ssub.s32 %s19, 2
      %s32 = sadd.s32 1, %s27
      %p33 = scmp.ge.s32.totalorder %s32, 3
      %s34 = scalar_select %p33, 0, %s32
      %s35 = sadd.s32 1, %s26
      %s36 = scalar_select %p33, %s35, %s26
      %p37 = scmp.ge.s32.totalorder %s36, 1
      %s38 = scalar_select %p37, 0, %s36
      %s39 = ssub.s32 %s26, %s38
      %p40 = scmp.eq.s32.totalorder %s39, 0
      %s42 = sadd.s32 %s41, 1
      %s43 = scalar_select %p40, %s41, %s42
      %p46 = pneg %p40
      %p47 = scmp.eq.s32.totalorder %s19, 2
      %p48 = por %p46, %p47
      %p49 = scmp.ne.s32.totalorder %s41, %s44
      %p50 = scmp.eq.s32.totalorder %s19, 0
      %p51 = por %p49, %p50
      %p52 = scmp.ne.s32.totalorder %s41, %s44
      %p53 = scmp.eq.s32.totalorder %s24, 2
      %p54 = por %p52, %p53
      %p55 = scmp.ne.s32.totalorder %s44, %s45
      %p56 = scmp.eq.s32.totalorder %s24, 0
      %p57 = por %p55, %p56
      %p58 = scmp.ne.s32.totalorder %s44, %s45
      %p59 = scmp.eq.s32.totalorder %s25, 2
      %p60 = por %p58, %p59
      %p62 = scmp.ne.s32.totalorder %s45, %s61
      %p63 = scmp.eq.s32.totalorder %s25, 0
      %p64 = por %p62, %p63
      %s65 = ssub.s32 %s26, %s38
      %p66 = scmp.eq.s32.totalorder %s65, 0
      %s68 = sadd.s32 %s67, 1
      %s69 = scalar_select %p66, %s67, %s68
      %p72 = pneg %p66
      %p73 = scmp.eq.s32.totalorder %s19, 2
      %p74 = por %p72, %p73
      %p75 = scmp.ne.s32.totalorder %s67, %s70
      %p76 = scmp.eq.s32.totalorder %s19, 0
      %p77 = por %p75, %p76
      %p78 = scmp.ne.s32.totalorder %s67, %s70
      %p79 = scmp.eq.s32.totalorder %s24, 2
      %p80 = por %p78, %p79
      %p81 = scmp.ne.s32.totalorder %s70, %s71
      %p82 = scmp.eq.s32.totalorder %s24, 0
      %p83 = por %p81, %p82
      %p84 = scmp.ne.s32.totalorder %s70, %s71
      %p85 = scmp.eq.s32.totalorder %s25, 2
      %p86 = por %p84, %p85
      %p88 = scmp.ne.s32.totalorder %s71, %s87
      %p89 = scmp.eq.s32.totalorder %s25, 0
      %p90 = por %p88, %p89
      %s91 = ssub.s32 %s27, %s34
      %p92 = scmp.eq.s32.totalorder %s91, 0
      %s94 = sadd.s32 %s93, 1
      %s95 = scalar_select %p92, %s93, %s94
      %p98 = pneg %p92
      %p99 = scmp.eq.s32.totalorder %s19, 2
      %p100 = por %p98, %p99
      %p101 = scmp.ne.s32.totalorder %s93, %s96
      %p102 = scmp.eq.s32.totalorder %s19, 0
      %p103 = por %p101, %p102
      %p104 = scmp.ne.s32.totalorder %s93, %s96
      %p105 = scmp.eq.s32.totalorder %s24, 2
      %p106 = por %p104, %p105
      %p107 = scmp.ne.s32.totalorder %s96, %s97
      %p108 = scmp.eq.s32.totalorder %s24, 0
      %p109 = por %p107, %p108
      %p110 = scmp.ne.s32.totalorder %s96, %s97
      %p111 = scmp.eq.s32.totalorder %s25, 2
      %p112 = por %p110, %p111
      %p114 = scmp.ne.s32.totalorder %s97, %s113
      %p115 = scmp.eq.s32.totalorder %s25, 0
      %p116 = por %p114, %p115
      %s118 = sadd.s32 %s117, 1
      %p121 = scmp.eq.s32.totalorder %s19, 2
      %p122 = scmp.ne.s32.totalorder %s117, %s119
      %p123 = scmp.eq.s32.totalorder %s19, 0
      %p124 = por %p122, %p123
      %p125 = scmp.ne.s32.totalorder %s117, %s119
      %p126 = scmp.eq.s32.totalorder %s24, 2
      %p127 = por %p125, %p126
      %p128 = scmp.ne.s32.totalorder %s119, %s120
      %p129 = scmp.eq.s32.totalorder %s24, 0
      %p130 = por %p128, %p129
      %p131 = scmp.ne.s32.totalorder %s119, %s120
      %p132 = scmp.eq.s32.totalorder %s25, 2
      %p133 = por %p131, %p132
      %p135 = scmp.ne.s32.totalorder %s120, %s134
      %p136 = scmp.eq.s32.totalorder %s25, 0
      %p137 = por %p135, %p136
      %s139 = sadd.s32 %s138, 1
      %p142 = scmp.eq.s32.totalorder %s19, 2
      %p143 = scmp.ne.s32.totalorder %s138, %s140
      %p144 = scmp.eq.s32.totalorder %s19, 0
      %p145 = por %p143, %p144
      %p146 = scmp.ne.s32.totalorder %s138, %s140
      %p147 = scmp.eq.s32.totalorder %s24, 2
      %p148 = por %p146, %p147
      %p149 = scmp.ne.s32.totalorder %s140, %s141
      %p150 = scmp.eq.s32.totalorder %s24, 0
      %p151 = por %p149, %p150
      %p152 = scmp.ne.s32.totalorder %s140, %s141
      %p153 = scmp.eq.s32.totalorder %s25, 2
      %p154 = por %p152, %p153
      %p156 = scmp.ne.s32.totalorder %s141, %s155
      %p157 = scmp.eq.s32.totalorder %s25, 0
      %p158 = por %p156, %p157
      %s159 = ssub.s32 %s27, %s34
      %p160 = scmp.eq.s32.totalorder %s159, 0
      %s162 = sadd.s32 %s161, 1
      %s163 = scalar_select %p160, %s161, %s162
      %p166 = pneg %p160
      %p167 = scmp.eq.s32.totalorder %s19, 2
      %p168 = por %p166, %p167
      %p169 = scmp.ne.s32.totalorder %s161, %s164
      %p170 = scmp.eq.s32.totalorder %s19, 0
      %p171 = por %p169, %p170
      %p172 = scmp.ne.s32.totalorder %s161, %s164
      %p173 = scmp.eq.s32.totalorder %s24, 2
      %p174 = por %p172, %p173
      %p175 = scmp.ne.s32.totalorder %s164, %s165
      %p176 = scmp.eq.s32.totalorder %s24, 0
      %p177 = por %p175, %p176
      %p178 = scmp.ne.s32.totalorder %s164, %s165
      %p179 = scmp.eq.s32.totalorder %s25, 2
      %p180 = por %p178, %p179
      %p182 = scmp.ne.s32.totalorder %s165, %s181
      %p183 = scmp.eq.s32.totalorder %s25, 0
      %p184 = por %p182, %p183
      %s185 = ssub.s32 %s27, %s34
      %p186 = scmp.eq.s32.totalorder %s185, 0
      %s188 = sadd.s32 %s187, 1
      %s189 = scalar_select %p186, %s187, %s188
      %p192 = pneg %p186
      %p193 = scmp.eq.s32.totalorder %s19, 2
      %p194 = por %p192, %p193
      %p195 = scmp.ne.s32.totalorder %s187, %s190
      %p196 = scmp.eq.s32.totalorder %s19, 0
      %p197 = por %p195, %p196
      %p198 = scmp.ne.s32.totalorder %s187, %s190
      %p199 = scmp.eq.s32.totalorder %s24, 2
      %p200 = por %p198, %p199
      %p201 = scmp.ne.s32.totalorder %s190, %s191
      %p202 = scmp.eq.s32.totalorder %s24, 0
      %p203 = por %p201, %p202
      %p204 = scmp.ne.s32.totalorder %s190, %s191
      %p205 = scmp.eq.s32.totalorder %s25, 2
      %p206 = por %p204, %p205
      %p208 = scmp.ne.s32.totalorder %s191, %s207
      %p209 = scmp.eq.s32.totalorder %s25, 0
      %p210 = por %p208, %p209
      %s212 = sadd.s32 %s211, 1
      %p215 = scmp.eq.s32.totalorder %s19, 2
      %p216 = scmp.ne.s32.totalorder %s211, %s213
      %p217 = scmp.eq.s32.totalorder %s19, 0
      %p218 = por %p216, %p217
      %p219 = scmp.ne.s32.totalorder %s211, %s213
      %p220 = scmp.eq.s32.totalorder %s24, 2
      %p221 = por %p219, %p220
      %p222 = scmp.ne.s32.totalorder %s213, %s214
      %p223 = scmp.eq.s32.totalorder %s24, 0
      %p224 = por %p222, %p223
      %p225 = scmp.ne.s32.totalorder %s213, %s214
      %p226 = scmp.eq.s32.totalorder %s25, 2
      %p227 = por %p225, %p226
      %p229 = scmp.ne.s32.totalorder %s214, %s228
      %p230 = scmp.eq.s32.totalorder %s25, 0
      %p231 = por %p229, %p230
      %s232 = ssub.s32 %s27, %s34
      %p233 = scmp.eq.s32.totalorder %s232, 0
      %s235 = sadd.s32 %s234, 1
      %s236 = scalar_select %p233, %s234, %s235
      %p239 = pneg %p233
      %p240 = scmp.eq.s32.totalorder %s19, 2
      %p241 = por %p239, %p240
      %p242 = scmp.ne.s32.totalorder %s234, %s237
      %p243 = scmp.eq.s32.totalorder %s19, 0
      %p244 = por %p242, %p243
      %p245 = scmp.ne.s32.totalorder %s234, %s237
      %p246 = scmp.eq.s32.totalorder %s24, 2
      %p247 = por %p245, %p246
      %p248 = scmp.ne.s32.totalorder %s237, %s238
      %p249 = scmp.eq.s32.totalorder %s24, 0
      %p250 = por %p248, %p249
      %p251 = scmp.ne.s32.totalorder %s237, %s238
      %p252 = scmp.eq.s32.totalorder %s25, 2
      %p253 = por %p251, %p252
      %p255 = scmp.ne.s32.totalorder %s238, %s254
      %p256 = scmp.eq.s32.totalorder %s25, 0
      %p257 = por %p255, %p256
      %s258 = ssub.s32 %s27, %s34
      %p259 = scmp.eq.s32.totalorder %s258, 0
      %s261 = sadd.s32 %s260, 1
      %s262 = scalar_select %p259, %s260, %s261
      %p265 = pneg %p259
      %p266 = scmp.eq.s32.totalorder %s19, 2
      %p267 = por %p265, %p266
      %p268 = scmp.ne.s32.totalorder %s260, %s263
      %p269 = scmp.eq.s32.totalorder %s19, 0
      %p270 = por %p268, %p269
      %p271 = scmp.ne.s32.totalorder %s260, %s263
      %p272 = scmp.eq.s32.totalorder %s24, 2
      %p273 = por %p271, %p272
      %p274 = scmp.ne.s32.totalorder %s263, %s264
      %p275 = scmp.eq.s32.totalorder %s24, 0
      %p276 = por %p274, %p275
      %p277 = scmp.ne.s32.totalorder %s263, %s264
      %p278 = scmp.eq.s32.totalorder %s25, 2
      %p279 = por %p277, %p278
      %p281 = scmp.ne.s32.totalorder %s264, %s280
      %p282 = scmp.eq.s32.totalorder %s25, 0
      %p283 = por %p281, %p282
      %s284 = ssub.s32 %s26, %s38
      %s285 = ssub.s32 %s27, %s34
      %s286 = sor.u32 %s284, %s285
      %p287 = scmp.eq.s32.totalorder %s286, 0
      %s289 = sadd.s32 %s288, 1
      %s290 = scalar_select %p287, %s288, %s289
      %p293 = pneg %p287
      %p294 = scmp.eq.s32.totalorder %s19, 2
      %p295 = por %p293, %p294
      %p296 = scmp.ne.s32.totalorder %s288, %s291
      %p297 = scmp.eq.s32.totalorder %s19, 0
      %p298 = por %p296, %p297
      %p299 = scmp.ne.s32.totalorder %s288, %s291
      %p300 = scmp.eq.s32.totalorder %s24, 2
      %p301 = por %p299, %p300
      %p302 = scmp.ne.s32.totalorder %s291, %s292
      %p303 = scmp.eq.s32.totalorder %s24, 0
      %p304 = por %p302, %p303
      %p305 = scmp.ne.s32.totalorder %s291, %s292
      %p306 = scmp.eq.s32.totalorder %s25, 2
      %p307 = por %p305, %p306
      %p309 = scmp.ne.s32.totalorder %s292, %s308
      %p310 = scmp.eq.s32.totalorder %s25, 0
      %p311 = por %p309, %p310
      %p312 = scmp.le.s32.totalorder 1, %s19
      %p313 = scmp.lt.s32.totalorder %s19, 4
      %p314 = pnand %p312, %p313
      %p315 = pneg %p314
      // Predicated region
      $region9: #{tpu_custom_call.1} parent=5 // pred_check
        _
      $region10: #{tpu_custom_call.1} parent=5 // pred_check_branch
        %317 = sbr.rel (%p314) target = $region12
      $region11: #{tpu_custom_call.1} parent=5 // pred_region
        %s318 = ssub.s32 %s19, 1
        // Predicated region
        $region13: #{tpu_custom_call.1} parent=11 // pred_check
          %p319 = pneg %p57
        $region14: #{tpu_custom_call.1} parent=11 // pred_check_branch
          %321 = sbr.rel (%p319) target = $region16
        $region15: #{tpu_custom_call.1} parent=11 // pred_region
          %p322 = scmp.lt.s32.totalorder %s28, 0
          %s323 = scalar_select %p322, %s28, 0
          %s324 = smul.addr %s323, 8
          %s325 = scalar_lea.vmem %s0, %s324
        $region16: #{tpu_custom_call.1} parent=11 // pred_fallthru
          _
        // Predicated region
        $region17: #{tpu_custom_call.1} parent=11 // pred_check
          %p326 = pneg %p83
        $region18: #{tpu_custom_call.1} parent=11 // pred_check_branch
          %328 = sbr.rel (%p326) target = $region20
        $region19: #{tpu_custom_call.1} parent=11 // pred_region
          %p329 = scmp.lt.s32.totalorder %s28, 0
          %s330 = scalar_select %p329, %s28, 0
          %s331 = smul.addr %s330, 8
          %s332 = scalar_lea.vmem %s1, %s331
        $region20: #{tpu_custom_call.1} parent=11 // pred_fallthru
          _
        // Predicated region
        $region21: #{tpu_custom_call.1} parent=11 // pred_check
          %p333 = pneg %p130
        $region22: #{tpu_custom_call.1} parent=11 // pred_check_branch
          %335 = sbr.rel (%p333) target = $region24
        $region23: #{tpu_custom_call.1} parent=11 // pred_region
          _
        $region24: #{tpu_custom_call.1} parent=11 // pred_fallthru
          _
        // Predicated region
        $region25: #{tpu_custom_call.1} parent=11 // pred_check
          %p336 = pneg %p151
        $region26: #{tpu_custom_call.1} parent=11 // pred_check_branch
          %338 = sbr.rel (%p336) target = $region28
        $region27: #{tpu_custom_call.1} parent=11 // pred_region
          _
        $region28: #{tpu_custom_call.1} parent=11 // pred_fallthru
          _
        // Predicated region
        $region29: #{tpu_custom_call.1} parent=11 // pred_check
          %p339 = pneg %p224
        $region30: #{tpu_custom_call.1} parent=11 // pred_check_branch
          %341 = sbr.rel (%p339) target = $region32
        $region31: #{tpu_custom_call.1} parent=11 // pred_region
          _
        $region32: #{tpu_custom_call.1} parent=11 // pred_fallthru
          _
      $region12: #{tpu_custom_call.1} parent=5 // pred_fallthru
        _
      %p342 = scmp.lt.s32.totalorder %s19, 3
      // Predicated region
      $region33: #{tpu_custom_call.1} parent=5 // pred_check
        %p343 = pneg %p342
      $region34: #{tpu_custom_call.1} parent=5 // pred_check_branch
        %345 = sbr.rel (%p343) target = $region36
      $region35: #{tpu_custom_call.1} parent=5 // pred_region
        // Predicated region
        $region37: #{tpu_custom_call.1} parent=35 // pred_check
          %p346 = pneg %p103
        $region38: #{tpu_custom_call.1} parent=35 // pred_check_branch
          %348 = sbr.rel (%p346) target = $region40
        $region39: #{tpu_custom_call.1} parent=35 // pred_region
          %p349 = scmp.lt.s32.totalorder %s27, 2
          %s350 = scalar_select %p349, %s27, 2
          %s351 = smul.addr %s350, 6
          %s352 = smul.addr %s351, 8
          %s353 = scalar_lea.vmem %s2, %s352
        $region40: #{tpu_custom_call.1} parent=35 // pred_fallthru
          _
        // Predicated region
        $region41: #{tpu_custom_call.1} parent=35 // pred_check
          %p354 = pneg %p171
        $region42: #{tpu_custom_call.1} parent=35 // pred_check_branch
          %356 = sbr.rel (%p354) target = $region44
        $region43: #{tpu_custom_call.1} parent=35 // pred_region
          %p357 = scmp.lt.s32.totalorder %s27, 2
          %s358 = scalar_select %p357, %s27, 2
          %s359 = smul.addr %s358, 12
          %s360 = smul.addr %s359, 8
          %s361 = scalar_lea.vmem %s5, %s360
        $region44: #{tpu_custom_call.1} parent=35 // pred_fallthru
          _
        // Predicated region
        $region45: #{tpu_custom_call.1} parent=35 // pred_check
          %p362 = pneg %p197
        $region46: #{tpu_custom_call.1} parent=35 // pred_check_branch
          %364 = sbr.rel (%p362) target = $region48
        $region47: #{tpu_custom_call.1} parent=35 // pred_region
          %p365 = scmp.lt.s32.totalorder %s27, 2
          %s366 = scalar_select %p365, %s27, 2
          %s367 = smul.addr %s366, 12
          %s368 = smul.addr %s367, 8
          %s369 = scalar_lea.vmem %s6, %s368
        $region48: #{tpu_custom_call.1} parent=35 // pred_fallthru
          _
        // Predicated region
        $region49: #{tpu_custom_call.1} parent=35 // pred_check
          %p370 = pneg %p244
        $region50: #{tpu_custom_call.1} parent=35 // pred_check_branch
          %372 = sbr.rel (%p370) target = $region52
        $region51: #{tpu_custom_call.1} parent=35 // pred_region
          %p373 = scmp.lt.s32.totalorder %s27, 2
          %s374 = scalar_select %p373, %s27, 2
          %s375 = smul.addr %s374, 4
          %s376 = smul.addr %s375, 8
          %s377 = scalar_lea.vmem %s8, %s376
        $region52: #{tpu_custom_call.1} parent=35 // pred_fallthru
          _
        // Predicated region
        $region53: #{tpu_custom_call.1} parent=35 // pred_check
          %p378 = pneg %p270
        $region54: #{tpu_custom_call.1} parent=35 // pred_check_branch
          %380 = sbr.rel (%p378) target = $region56
        $region55: #{tpu_custom_call.1} parent=35 // pred_region
          %p381 = scmp.lt.s32.totalorder %s27, 2
          %s382 = scalar_select %p381, %s27, 2
          %s383 = scalar_lea.vmem %s9, %s382
        $region56: #{tpu_custom_call.1} parent=35 // pred_fallthru
          _
      $region36: #{tpu_custom_call.1} parent=5 // pred_fallthru
        _
      %p384 = scmp.le.s32.totalorder 1, %s19
      %p385 = scmp.lt.s32.totalorder %s19, 4
      %p386 = pnand %p384, %p385
      %p387 = pneg %p386
      // Predicated region
      $region57: #{tpu_custom_call.1} parent=5 // pred_check
        _
      $region58: #{tpu_custom_call.1} parent=5 // pred_check_branch
        %389 = sbr.rel (%p386) target = $region60
      $region59: #{tpu_custom_call.1} parent=5 // pred_region
        %s390 = ssub.s32 %s19, 1
        %p391 = scmp.lt.s32.totalorder %s28, 0
        %s392 = scalar_select %p391, %s28, 0
        %s393 = smul.addr %s392, 8
        %s394 = scalar_lea.vmem %s0, %s393
        %p395 = pneg %p57
        %p396 = pneg %p54
        %p397 = scmp.lt.s32.totalorder %s28, 0
        %s398 = scalar_select %p397, %s28, 0
        %s399 = smul.addr %s398, 8
        %s400 = scalar_lea.vmem %s1, %s399
        %p401 = pneg %p83
        %p402 = pneg %p80
        %p403 = scmp.lt.s32.totalorder %s29, 2
        %s404 = scalar_select %p403, %s29, 2
        %s405 = smul.addr %s404, 6
        %s406 = smul.addr %s405, 8
        %s407 = scalar_lea.vmem %s2, %s406
        %p408 = pneg %p109
        %p409 = pneg %p106
        %p410 = pneg %p130
        %p411 = pneg %p127
        %p412 = pneg %p151
        %p413 = pneg %p148
        %p414 = scmp.lt.s32.totalorder %s29, 2
        %s415 = scalar_select %p414, %s29, 2
        %s416 = smul.addr %s415, 12
        %s417 = smul.addr %s416, 8
        %s418 = scalar_lea.vmem %s5, %s417
        %p419 = pneg %p177
        %p420 = pneg %p174
        %p421 = scmp.lt.s32.totalorder %s29, 2
        %s422 = scalar_select %p421, %s29, 2
        %s423 = smul.addr %s422, 12
        %s424 = smul.addr %s423, 8
        %s425 = scalar_lea.vmem %s6, %s424
        %p426 = pneg %p203
        %p427 = pneg %p200
        %p428 = pneg %p224
        %p429 = pneg %p221
        %p430 = scmp.lt.s32.totalorder %s29, 2
        %s431 = scalar_select %p430, %s29, 2
        %s432 = smul.addr %s431, 4
        %s433 = smul.addr %s432, 8
        %s434 = scalar_lea.vmem %s8, %s433
        %p435 = pneg %p250
        %p436 = pneg %p247
        %p437 = scmp.lt.s32.totalorder %s29, 2
        %s438 = scalar_select %p437, %s29, 2
        %s439 = scalar_lea.vmem %s9, %s438
        %p440 = pneg %p276
        %p441 = pneg %p273
        %p442 = pneg %p304
        %p443 = pneg %p301
        %s444 = sand.u32 %s291, 1
        %s445 = scalar_lea.sflag [#allocation3], %s444
        %s446 = sand.u32 %s291, 1
        %s447 = smul.addr %s446, 8
        %s448 = scalar_lea.vmem [#allocation2], %s447
        %p449 = scmp.lt.s32.totalorder %s28, 0
        %s450 = scalar_select %p449, %s28, 0
        %s451 = smul.addr %s450, 8
        %s452 = scalar_lea.vmem %s0, %s451
        %p453 = scmp.lt.s32.totalorder %s28, 0
        %s454 = scalar_select %p453, %s28, 0
        %s455 = smul.addr %s454, 8
        %s456 = scalar_lea.vmem %s1, %s455
        %p457 = scmp.lt.s32.totalorder %s29, 2
        %s458 = scalar_select %p457, %s29, 2
        %s459 = smul.addr %s458, 6
        %s460 = smul.addr %s459, 8
        %s461 = scalar_lea.vmem %s2, %s460
        %p462 = scmp.lt.s32.totalorder %s29, 2
        %s463 = scalar_select %p462, %s29, 2
        %s464 = smul.addr %s463, 12
        %s465 = smul.addr %s464, 8
        %s466 = scalar_lea.vmem %s5, %s465
        %p467 = scmp.lt.s32.totalorder %s29, 2
        %s468 = scalar_select %p467, %s29, 2
        %s469 = smul.addr %s468, 12
        %s470 = smul.addr %s469, 8
        %s471 = scalar_lea.vmem %s6, %s470
        %p472 = scmp.lt.s32.totalorder %s29, 2
        %s473 = scalar_select %p472, %s29, 2
        %s474 = smul.addr %s473, 4
        %s475 = smul.addr %s474, 8
        %s476 = scalar_lea.vmem %s8, %s475
        %p477 = scmp.lt.s32.totalorder %s29, 2
        %s478 = scalar_select %p477, %s29, 2
        %s479 = scalar_lea.vmem %s9, %s478
        %v480 = vld [vmem:[%s452] sm:$0xff]
        %v481 = vld [vmem:[%s456] sm:$0xff]
        %v482 = vld [vmem:[%s461] sm:$0xff]
        %v483 = vld [vmem:[%s461 + $0x8] sm:$0xff]
        %v484 = vld [vmem:[%s461 + $0x10] sm:$0xff]
        %v485 = vld [vmem:[%s461 + $0x18] sm:$0xff]
        %v486 = vld [vmem:[%s461 + $0x20] sm:$0xff]
        %v487 = vld [vmem:[%s461 + $0x28] sm:$0xff]
        %v488 = vld [vmem:[%s3] sm:$0x1]
        %v490 = vlaneseq
        %v491 = vshrl.u32 %v490, 7
        %v492 = vsub.s32 0, %v491
        %v493 = vrot.slane %v488, %v492
        %vm495 = vcmask 392192
        %v497 = vsel %vm495, %v480, 0
        %499 = vmatprep.subr.mxu0 0.0
        %500 = vmatpush1.msra.mxu0 0.0
        %501 = vmatprep.subr.mxu0 0.0
        %502 = vmatpush1.msra.mxu0 0.0
        %503 = vmatprep.subr.mxu0 0.0
        %504 = vmatpush1.msra.mxu0 0.0
        %505 = vmatprep.subr.mxu0 0.0
        %506 = vmatpush1.msra.mxu0 0.0
        %507 = vmatprep.subr.mxu0 0.0
        %508 = vmatpush1.msra.mxu0 0.0
        %509 = vmatprep.subr.mxu0 0.0
        %510 = vmatpush1.msra.mxu0 0.0
        %511 = vmatprep.subr.mxu0 0.0
        %512 = vmatpush1.msra.mxu0 0.0
        %513 = vmatprep.subr.mxu0 0.0
        %514 = vmatpush1.msra.mxu0 0.0
        %515 = vmatprep.subr.mxu0 0.0
        %516 = vmatpush1.msra.mxu0 0.0
        %517 = vmatprep.subr.mxu0 0.0
        %518 = vmatpush1.msra.mxu0 0.0
        %519 = vmatprep.subr.mxu0 0.0
        %520 = vmatpush1.msra.mxu0 %v487
        %521 = vmatprep.subr.mxu0 0.0
        %522 = vmatpush1.msra.mxu0 %v486
        %523 = vmatprep.subr.mxu0 0.0
        %524 = vmatpush1.msra.mxu0 %v485
        %525 = vmatprep.subr.mxu0 0.0
        %526 = vmatpush1.msra.mxu0 %v484
        %527 = vmatprep.subr.mxu0 0.0
        %528 = vmatpush1.msra.mxu0 %v483
        %529 = vmatprep.subr.mxu0 0.0
        %530 = vmatpush1.msra.mxu0 %v482
        %531 = vmatprep.subr.mxu0 0.0
        %532 = vmatpush2.msra.mxu0 0.0
        %533 = vmatprep.subr.mxu0 0.0
        %534 = vmatpush2.msra.mxu0 0.0
        %535 = vmatprep.subr.mxu0 0.0
        %536 = vmatpush2.msra.mxu0 0.0
        %537 = vmatprep.subr.mxu0 0.0
        %538 = vmatpush2.msra.mxu0 0.0
        %539 = vmatprep.subr.mxu0 0.0
        %540 = vmatpush2.msra.mxu0 0.0
        %541 = vmatprep.subr.mxu0 0.0
        %542 = vmatpush2.msra.mxu0 0.0
        %543 = vmatprep.subr.mxu0 0.0
        %544 = vmatpush2.msra.mxu0 0.0
        %545 = vmatprep.subr.mxu0 0.0
        %546 = vmatpush2.msra.mxu0 0.0
        %547 = vmatprep.subr.mxu0 0.0
        %548 = vmatpush2.msra.mxu0 0.0
        %549 = vmatprep.subr.mxu0 0.0
        %550 = vmatpush2.msra.mxu0 0.0
        %551 = vmatprep.subr.mxu0 0.0
        %552 = vmatpush2.msra.mxu0 0.0
        %553 = vmatprep.subr.mxu0 0.0
        %554 = vmatpush2.msra.mxu0 0.0
        %555 = vmatprep.subr.mxu0 0.0
        %556 = vmatpush2.msra.mxu0 0.0
        %557 = vmatprep.subr.mxu0 0.0
        %558 = vmatpush2.msra.mxu0 0.0
        %559 = vmatprep.subr.mxu0 0.0
        %560 = vmatpush2.msra.mxu0 0.0
        %561 = vmatprep.subr.mxu0 0.0
        %562 = vmatpush2.msra.mxu0 0.0
        %563 = vmatprep.mubr.f32.mxu0 0.0
        %564 = vmatmul.mubr.f32.gmra.mxu0 %v497
        %v565 = vpop.f32.mrf.mxu0
        %v566 = vadd.f32 %v493, %v565
        %v567 = vpop.f32.mrf.mxu0
        %568 = vdwg.mxu0
        %v569 = vmax.f32 %v566, 0.0
        %v570 = vld [vmem:[%s471] sm:$0xff]
        %v571 = vld [vmem:[%s471 + $0x8] sm:$0xff]
        %v572 = vld [vmem:[%s471 + $0x10] sm:$0xff]
        %v573 = vld [vmem:[%s471 + $0x18] sm:$0xff]
        %v574 = vld [vmem:[%s471 + $0x20] sm:$0xff]
        %v575 = vld [vmem:[%s471 + $0x28] sm:$0xff]
        %v576 = vld [vmem:[%s471 + $0x30] sm:$0xff]
        %v577 = vld [vmem:[%s471 + $0x38] sm:$0xff]
        %v578 = vld [vmem:[%s471 + $0x40] sm:$0xff]
        %v579 = vld [vmem:[%s471 + $0x48] sm:$0xff]
        %v580 = vld [vmem:[%s471 + $0x50] sm:$0xff]
        %v581 = vld [vmem:[%s471 + $0x58] sm:$0xff]
        %vm582 = vcmask 785408
        %v584 = vsel %vm582, %v481, 0
        %586 = vmatprep.subr.mxu0 0.0
        %587 = vmatpush1.msra.mxu0 0.0
        %588 = vmatprep.subr.mxu0 0.0
        %589 = vmatpush1.msra.mxu0 0.0
        %590 = vmatprep.subr.mxu0 0.0
        %591 = vmatpush1.msra.mxu0 0.0
        %592 = vmatprep.subr.mxu0 0.0
        %593 = vmatpush1.msra.mxu0 0.0
        %594 = vmatprep.subr.mxu0 0.0
        %595 = vmatpush1.msra.mxu0 %v581
        %596 = vmatprep.subr.mxu0 0.0
        %597 = vmatpush1.msra.mxu0 %v580
        %598 = vmatprep.subr.mxu0 0.0
        %599 = vmatpush1.msra.mxu0 %v579
        %600 = vmatprep.subr.mxu0 0.0
        %601 = vmatpush1.msra.mxu0 %v578
        %602 = vmatprep.subr.mxu0 0.0
        %603 = vmatpush1.msra.mxu0 %v577
        %604 = vmatprep.subr.mxu0 0.0
        %605 = vmatpush1.msra.mxu0 %v576
        %606 = vmatprep.subr.mxu0 0.0
        %607 = vmatpush1.msra.mxu0 %v575
        %608 = vmatprep.subr.mxu0 0.0
        %609 = vmatpush1.msra.mxu0 %v574
        %610 = vmatprep.subr.mxu0 0.0
        %611 = vmatpush1.msra.mxu0 %v573
        %612 = vmatprep.subr.mxu0 0.0
        %613 = vmatpush1.msra.mxu0 %v572
        %614 = vmatprep.subr.mxu0 0.0
        %615 = vmatpush1.msra.mxu0 %v571
        %616 = vmatprep.subr.mxu0 0.0
        %617 = vmatpush1.msra.mxu0 %v570
        %618 = vmatprep.subr.mxu0 0.0
        %619 = vmatpush2.msra.mxu0 0.0
        %620 = vmatprep.subr.mxu0 0.0
        %621 = vmatpush2.msra.mxu0 0.0
        %622 = vmatprep.subr.mxu0 0.0
        %623 = vmatpush2.msra.mxu0 0.0
        %624 = vmatprep.subr.mxu0 0.0
        %625 = vmatpush2.msra.mxu0 0.0
        %626 = vmatprep.subr.mxu0 0.0
        %627 = vmatpush2.msra.mxu0 0.0
        %628 = vmatprep.subr.mxu0 0.0
        %629 = vmatpush2.msra.mxu0 0.0
        %630 = vmatprep.subr.mxu0 0.0
        %631 = vmatpush2.msra.mxu0 0.0
        %632 = vmatprep.subr.mxu0 0.0
        %633 = vmatpush2.msra.mxu0 0.0
        %634 = vmatprep.subr.mxu0 0.0
        %635 = vmatpush2.msra.mxu0 0.0
        %636 = vmatprep.subr.mxu0 0.0
        %637 = vmatpush2.msra.mxu0 0.0
        %638 = vmatprep.subr.mxu0 0.0
        %639 = vmatpush2.msra.mxu0 0.0
        %640 = vmatprep.subr.mxu0 0.0
        %641 = vmatpush2.msra.mxu0 0.0
        %642 = vmatprep.subr.mxu0 0.0
        %643 = vmatpush2.msra.mxu0 0.0
        %644 = vmatprep.subr.mxu0 0.0
        %645 = vmatpush2.msra.mxu0 0.0
        %646 = vmatprep.subr.mxu0 0.0
        %647 = vmatpush2.msra.mxu0 0.0
        %648 = vmatprep.subr.mxu0 0.0
        %649 = vmatpush2.msra.mxu0 0.0
        %650 = vmatprep.mubr.f32.mxu0 0.0
        %651 = vmatmul.mubr.f32.gmra.mxu0 %v584
        %v652 = vpop.f32.mrf.mxu0
        %v653 = vadd.f32 0.0, %v652
        %v654 = vpop.f32.mrf.mxu0
        %655 = vdwg.mxu0
        %v656 = vld [vmem:[%s4] sm:$0xff]
        %v657 = vld [vmem:[%s4 + $0x8] sm:$0xff]
        %v658 = vld [vmem:[%s4 + $0x10] sm:$0xff]
        %v659 = vld [vmem:[%s4 + $0x18] sm:$0xff]
        %v660 = vld [vmem:[%s466] sm:$0xff]
        %v661 = vld [vmem:[%s466 + $0x8] sm:$0xff]
        %v662 = vld [vmem:[%s466 + $0x10] sm:$0xff]
        %v663 = vld [vmem:[%s466 + $0x18] sm:$0xff]
        %v664 = vld [vmem:[%s466 + $0x20] sm:$0xff]
        %v665 = vld [vmem:[%s466 + $0x28] sm:$0xff]
        %v666 = vld [vmem:[%s466 + $0x30] sm:$0xff]
        %v667 = vld [vmem:[%s466 + $0x38] sm:$0xff]
        %v668 = vld [vmem:[%s466 + $0x40] sm:$0xff]
        %v669 = vld [vmem:[%s466 + $0x48] sm:$0xff]
        %v670 = vld [vmem:[%s466 + $0x50] sm:$0xff]
        %v671 = vld [vmem:[%s466 + $0x58] sm:$0xff]
        %672 = vmatprep.subr.mxu0 0.0
        %673 = vmatpush1.msra.mxu0 0.0
        %674 = vmatprep.subr.mxu0 0.0
        %675 = vmatpush1.msra.mxu0 0.0
        %676 = vmatprep.subr.mxu0 0.0
        %677 = vmatpush1.msra.mxu0 0.0
        %678 = vmatprep.subr.mxu0 0.0
        %679 = vmatpush1.msra.mxu0 0.0
        %680 = vmatprep.subr.mxu0 0.0
        %681 = vmatpush1.msra.mxu0 %v671
        %682 = vmatprep.subr.mxu0 0.0
        %683 = vmatpush1.msra.mxu0 %v670
        %684 = vmatprep.subr.mxu0 0.0
        %685 = vmatpush1.msra.mxu0 %v669
        %686 = vmatprep.subr.mxu0 0.0
        %687 = vmatpush1.msra.mxu0 %v668
        %688 = vmatprep.subr.mxu0 0.0
        %689 = vmatpush1.msra.mxu0 %v667
        %690 = vmatprep.subr.mxu0 0.0
        %691 = vmatpush1.msra.mxu0 %v666
        %692 = vmatprep.subr.mxu0 0.0
        %693 = vmatpush1.msra.mxu0 %v665
        %694 = vmatprep.subr.mxu0 0.0
        %695 = vmatpush1.msra.mxu0 %v664
        %696 = vmatprep.subr.mxu0 0.0
        %697 = vmatpush1.msra.mxu0 %v663
        %698 = vmatprep.subr.mxu0 0.0
        %699 = vmatpush1.msra.mxu0 %v662
        %700 = vmatprep.subr.mxu0 0.0
        %701 = vmatpush1.msra.mxu0 %v661
        %702 = vmatprep.subr.mxu0 0.0
        %703 = vmatpush1.msra.mxu0 %v660
        %704 = vmatprep.subr.mxu0 0.0
        %705 = vmatpush2.msra.mxu0 0.0
        %706 = vmatprep.subr.mxu0 0.0
        %707 = vmatpush2.msra.mxu0 0.0
        %708 = vmatprep.subr.mxu0 0.0
        %709 = vmatpush2.msra.mxu0 0.0
        %710 = vmatprep.subr.mxu0 0.0
        %711 = vmatpush2.msra.mxu0 0.0
        %712 = vmatprep.subr.mxu0 0.0
        %713 = vmatpush2.msra.mxu0 0.0
        %714 = vmatprep.subr.mxu0 0.0
        %715 = vmatpush2.msra.mxu0 0.0
        %716 = vmatprep.subr.mxu0 0.0
        %717 = vmatpush2.msra.mxu0 0.0
        %718 = vmatprep.subr.mxu0 0.0
        %719 = vmatpush2.msra.mxu0 0.0
        %720 = vmatprep.subr.mxu0 0.0
        %721 = vmatpush2.msra.mxu0 0.0
        %722 = vmatprep.subr.mxu0 0.0
        %723 = vmatpush2.msra.mxu0 0.0
        %724 = vmatprep.subr.mxu0 0.0
        %725 = vmatpush2.msra.mxu0 0.0
        %726 = vmatprep.subr.mxu0 0.0
        %727 = vmatpush2.msra.mxu0 0.0
        %728 = vmatprep.subr.mxu0 0.0
        %729 = vmatpush2.msra.mxu0 0.0
        %730 = vmatprep.subr.mxu0 0.0
        %731 = vmatpush2.msra.mxu0 0.0
        %732 = vmatprep.subr.mxu0 0.0
        %733 = vmatpush2.msra.mxu0 0.0
        %734 = vmatprep.subr.mxu0 0.0
        %735 = vmatpush2.msra.mxu0 0.0
        %736 = vmatprep.mubr.f32.mxu0 0.0
        %737 = vmatmul.mubr.f32.gmra.mxu0 %v584
        %v738 = vpop.f32.mrf.mxu0
        %v739 = vadd.f32 0.0, %v738
        %v740 = vpop.f32.mrf.mxu0
        %741 = vdwg.mxu0
        %vm742 = vcmask 261120
        %v744 = vsel %vm742, %v569, 0
        %746 = vmatprep.subr.mxu0 0.0
        %747 = vmatpush1.msra.mxu0 0.0
        %748 = vmatprep.subr.mxu0 0.0
        %749 = vmatpush1.msra.mxu0 0.0
        %750 = vmatprep.subr.mxu0 0.0
        %751 = vmatpush1.msra.mxu0 0.0
        %752 = vmatprep.subr.mxu0 0.0
        %753 = vmatpush1.msra.mxu0 0.0
        %754 = vmatprep.subr.mxu0 0.0
        %755 = vmatpush1.msra.mxu0 0.0
        %756 = vmatprep.subr.mxu0 0.0
        %757 = vmatpush1.msra.mxu0 0.0
        %758 = vmatprep.subr.mxu0 0.0
        %759 = vmatpush1.msra.mxu0 0.0
        %760 = vmatprep.subr.mxu0 0.0
        %761 = vmatpush1.msra.mxu0 0.0
        %762 = vmatprep.subr.mxu0 0.0
        %763 = vmatpush1.msra.mxu0 0.0
        %764 = vmatprep.subr.mxu0 0.0
        %765 = vmatpush1.msra.mxu0 0.0
        %766 = vmatprep.subr.mxu0 0.0
        %767 = vmatpush1.msra.mxu0 0.0
        %768 = vmatprep.subr.mxu0 0.0
        %769 = vmatpush1.msra.mxu0 0.0
        %770 = vmatprep.subr.mxu0 0.0
        %771 = vmatpush1.msra.mxu0 %v659
        %772 = vmatprep.subr.mxu0 0.0
        %773 = vmatpush1.msra.mxu0 %v658
        %774 = vmatprep.subr.mxu0 0.0
        %775 = vmatpush1.msra.mxu0 %v657
        %776 = vmatprep.subr.mxu0 0.0
        %777 = vmatpush1.msra.mxu0 %v656
        %778 = vmatprep.subr.mxu0 0.0
        %779 = vmatpush2.msra.mxu0 0.0
        %780 = vmatprep.subr.mxu0 0.0
        %781 = vmatpush2.msra.mxu0 0.0
        %782 = vmatprep.subr.mxu0 0.0
        %783 = vmatpush2.msra.mxu0 0.0
        %784 = vmatprep.subr.mxu0 0.0
        %785 = vmatpush2.msra.mxu0 0.0
        %786 = vmatprep.subr.mxu0 0.0
        %787 = vmatpush2.msra.mxu0 0.0
        %788 = vmatprep.subr.mxu0 0.0
        %789 = vmatpush2.msra.mxu0 0.0
        %790 = vmatprep.subr.mxu0 0.0
        %791 = vmatpush2.msra.mxu0 0.0
        %792 = vmatprep.subr.mxu0 0.0
        %793 = vmatpush2.msra.mxu0 0.0
        %794 = vmatprep.subr.mxu0 0.0
        %795 = vmatpush2.msra.mxu0 0.0
        %796 = vmatprep.subr.mxu0 0.0
        %797 = vmatpush2.msra.mxu0 0.0
        %798 = vmatprep.subr.mxu0 0.0
        %799 = vmatpush2.msra.mxu0 0.0
        %800 = vmatprep.subr.mxu0 0.0
        %801 = vmatpush2.msra.mxu0 0.0
        %802 = vmatprep.subr.mxu0 0.0
        %803 = vmatpush2.msra.mxu0 0.0
        %804 = vmatprep.subr.mxu0 0.0
        %805 = vmatpush2.msra.mxu0 0.0
        %806 = vmatprep.subr.mxu0 0.0
        %807 = vmatpush2.msra.mxu0 0.0
        %808 = vmatprep.subr.mxu0 0.0
        %809 = vmatpush2.msra.mxu0 0.0
        %810 = vmatprep.mubr.f32.mxu0 0.0
        %811 = vmatmul.mubr.f32.gmra.mxu0 %v744
        %v812 = vpop.f32.mrf.mxu0
        %v813 = vadd.f32 %v739, %v812
        %v814 = vpop.f32.mrf.mxu0
        %815 = vdwg.mxu0
        %v816 = vld [vmem:[%s7] sm:$0x1]
        %v818 = vlaneseq
        %v819 = vshrl.u32 %v818, 7
        %v820 = vsub.s32 0, %v819
        %v821 = vrot.slane %v816, %v820
        %v823 = vadd.f32 %v813, %v821
        %v824 = vxor.u32 %v823, 2147483648
        %v825 = vmul.f32 %v824, 1.442695
        %v826 = vpow.pop %v825
        %v827 = vadd.f32 %v826, 1.0
        %v828 = vrcp.pop %v827
        %v829 = vmul.f32 1.0, %v828
        %831 = vrot.lane.b32.xlu0 %v823, 32
        %v832 = vpop.permute.xlu0 %831
        %v834 = vmul.f32 %v829, %v832
        %836 = vrot.lane.b32.xlu0 %v834, 64
        %v837 = vpop.permute.xlu0 %836
        %v839 = vadd.f32 %v823, %v837
        %v840 = vtanh.pop %v839
        %v841 = vsub.f32 1.0, %v829
        %843 = vrot.lane.b32.xlu0 %v840, 96
        %v844 = vpop.permute.xlu0 %843
        %v846 = vmul.f32 %v841, %v844
        %848 = vrot.lane.b32.xlu0 %v653, 32
        %v849 = vpop.permute.xlu0 %848
        %v851 = vmul.f32 %v829, %v849
        %v852 = vadd.f32 %v846, %v851
        %v853 = vld [vmem:[%s476] sm:$0xff]
        %v854 = vld [vmem:[%s476 + $0x8] sm:$0xff]
        %v855 = vld [vmem:[%s476 + $0x10] sm:$0xff]
        %v856 = vld [vmem:[%s476 + $0x18] sm:$0xff]
        %v857 = vld [vmem:[%s479] sm:$0x1]
        %v859 = vlaneseq
        %v860 = vshrl.u32 %v859, 7
        %v861 = vsub.s32 0, %v860
        %v862 = vrot.slane %v857, %v861
        %865 = vrot.lane.b32.xlu0 %v852, 96
        %v866 = vpop.permute.xlu0 %865
        %v867 = vsel %vm742, %v866, 0
        %869 = vmatprep.subr.mxu0 0.0
        %870 = vmatpush1.msra.mxu0 0.0
        %871 = vmatprep.subr.mxu0 0.0
        %872 = vmatpush1.msra.mxu0 0.0
        %873 = vmatprep.subr.mxu0 0.0
        %874 = vmatpush1.msra.mxu0 0.0
        %875 = vmatprep.subr.mxu0 0.0
        %876 = vmatpush1.msra.mxu0 0.0
        %877 = vmatprep.subr.mxu0 0.0
        %878 = vmatpush1.msra.mxu0 0.0
        %879 = vmatprep.subr.mxu0 0.0
        %880 = vmatpush1.msra.mxu0 0.0
        %881 = vmatprep.subr.mxu0 0.0
        %882 = vmatpush1.msra.mxu0 0.0
        %883 = vmatprep.subr.mxu0 0.0
        %884 = vmatpush1.msra.mxu0 0.0
        %885 = vmatprep.subr.mxu0 0.0
        %886 = vmatpush1.msra.mxu0 0.0
        %887 = vmatprep.subr.mxu0 0.0
        %888 = vmatpush1.msra.mxu0 0.0
        %889 = vmatprep.subr.mxu0 0.0
        %890 = vmatpush1.msra.mxu0 0.0
        %891 = vmatprep.subr.mxu0 0.0
        %892 = vmatpush1.msra.mxu0 0.0
        %893 = vmatprep.subr.mxu0 0.0
        %894 = vmatpush1.msra.mxu0 %v856
        %895 = vmatprep.subr.mxu0 0.0
        %896 = vmatpush1.msra.mxu0 %v855
        %897 = vmatprep.subr.mxu0 0.0
        %898 = vmatpush1.msra.mxu0 %v854
        %899 = vmatprep.subr.mxu0 0.0
        %900 = vmatpush1.msra.mxu0 %v853
        %901 = vmatprep.subr.mxu0 0.0
        %902 = vmatpush2.msra.mxu0 0.0
        %903 = vmatprep.subr.mxu0 0.0
        %904 = vmatpush2.msra.mxu0 0.0
        %905 = vmatprep.subr.mxu0 0.0
        %906 = vmatpush2.msra.mxu0 0.0
        %907 = vmatprep.subr.mxu0 0.0
        %908 = vmatpush2.msra.mxu0 0.0
        %909 = vmatprep.subr.mxu0 0.0
        %910 = vmatpush2.msra.mxu0 0.0
        %911 = vmatprep.subr.mxu0 0.0
        %912 = vmatpush2.msra.mxu0 0.0
        %913 = vmatprep.subr.mxu0 0.0
        %914 = vmatpush2.msra.mxu0 0.0
        %915 = vmatprep.subr.mxu0 0.0
        %916 = vmatpush2.msra.mxu0 0.0
        %917 = vmatprep.subr.mxu0 0.0
        %918 = vmatpush2.msra.mxu0 0.0
        %919 = vmatprep.subr.mxu0 0.0
        %920 = vmatpush2.msra.mxu0 0.0
        %921 = vmatprep.subr.mxu0 0.0
        %922 = vmatpush2.msra.mxu0 0.0
        %923 = vmatprep.subr.mxu0 0.0
        %924 = vmatpush2.msra.mxu0 0.0
        %925 = vmatprep.subr.mxu0 0.0
        %926 = vmatpush2.msra.mxu0 0.0
        %927 = vmatprep.subr.mxu0 0.0
        %928 = vmatpush2.msra.mxu0 0.0
        %929 = vmatprep.subr.mxu0 0.0
        %930 = vmatpush2.msra.mxu0 0.0
        %931 = vmatprep.subr.mxu0 0.0
        %932 = vmatpush2.msra.mxu0 0.0
        %933 = vmatprep.mubr.f32.mxu0 0.0
        %934 = vmatmul.mubr.f32.gmra.mxu0 %v867
        %v935 = vpop.f32.mrf.mxu0
        %v936 = vadd.f32 %v862, %v935
        %v937 = vpop.f32.mrf.mxu0
        %938 = vdwg.mxu0
        %939 = vst [vmem:[%s448] sm:$0xff] %v936
        %s940 = sand.u32 %s291, 1
        %s941 = scalar_lea.sflag [#allocation3], %s940
        %s942 = sand.u32 %s291, 1
        %s943 = smul.addr %s942, 8
        %s944 = scalar_lea.vmem [#allocation2], %s943
        // Predicated region
        $region61: #{tpu_custom_call.1} parent=59 // pred_check
          %p945 = pneg %p301
        $region62: #{tpu_custom_call.1} parent=59 // pred_check_branch
          %947 = sbr.rel (%p945) target = $region64
        $region63: #{tpu_custom_call.1} parent=59 // pred_region
          %s949 = ssub.s32 128, 128
          %950 = vsyncadd %s941, %s949
          %s951 = smul.addr %s28, 3
          %s952 = sadd.s32 %s29, %s951
          %s953 = smul.addr %s952, 128
          %s954 = scalar_lea.hbm %s10, %s953
          %s956 = sshll.u32 %s944, 4
          %s957 = int_to_ptr.vmem [resolvable:$true] %s956
          %959 = dma.vmem_to_hbm [thread:$0]  %s957, 128, %s954, %s941
        $region64: #{tpu_custom_call.1} parent=59 // pred_fallthru
          _
      $region60: #{tpu_custom_call.1} parent=5 // pred_fallthru
        _
      %p960 = scmp.le.s32.totalorder 2, %s19
      // Predicated region
      $region65: #{tpu_custom_call.1} parent=5 // pred_check
        %p961 = pneg %p960
      $region66: #{tpu_custom_call.1} parent=5 // pred_check_branch
        %963 = sbr.rel (%p961) target = $region68
      $region67: #{tpu_custom_call.1} parent=5 // pred_region
        %s964 = ssub.s32 %s19, 2
        // Predicated region
        $region69: #{tpu_custom_call.1} parent=67 // pred_check
          %p965 = pneg %p307
        $region70: #{tpu_custom_call.1} parent=67 // pred_check_branch
          %967 = sbr.rel (%p965) target = $region72
        $region71: #{tpu_custom_call.1} parent=67 // pred_region
          %s968 = sand.u32 %s292, 1
          %s969 = scalar_lea.sflag [#allocation3], %s968
          %s970 = sand.u32 %s292, 1
          %s971 = smul.addr %s970, 8
          %s972 = scalar_lea.vmem [#allocation2], %s971
          %973 = dma.done %s969, 128
        $region72: #{tpu_custom_call.1} parent=67 // pred_fallthru
          _
      $region68: #{tpu_custom_call.1} parent=5 // pred_fallthru
        _
    $region6: #{tpu_custom_call.1} parent=1 // loop_footer
      %s23 = sadd.s32 1, %s19
    $region7: #{tpu_custom_call.1} parent=1 // loop_footer_branch
      %18 = sbr.rel target = $region3
    $region8: #{tpu_custom_call.1} parent=1 // loop_exit
      _
    %974 = vsyncpa [#allocation3], 1
    %s975 = scalar_lea.sflag [#allocation3], 1
    %976 = vsyncpa %s975, 1

</llo_original>
